<compile_context>
chip_gen: v7x
topology: tpu7x:2x2x1
jax: 0.10.0
libtpu: 0.0.40
codegen_flags: <defaults>
</compile_context>

<pallas_src>
import jax
import jax.numpy as jnp
from jax.experimental import pallas as pl
from jax.experimental.pallas import tpu as pltpu


_LANE_CHUNK = 1024      # in-kernel reduce chunk (bounds the x*w temporary)
_MAX_D_BLOCK = 8192     # max columns per grid step along D (robustness for huge D)


def _reduce_rows(x_ref, w_ref, tb, td):
    """sum(x * w, axis=-1, keepdims=True) in lane-chunks (bounded temp + partial sums)."""
    n_full = td // _LANE_CHUNK
    rem = td - n_full * _LANE_CHUNK
    acc = jnp.zeros((tb, 1), jnp.float32)
    if n_full > 0:
        def body(c, a):
            s = pl.multiple_of(c * _LANE_CHUNK, _LANE_CHUNK)
            xc = x_ref[:, pl.ds(s, _LANE_CHUNK)]
            wc = w_ref[:, pl.ds(s, _LANE_CHUNK)]
            return a + jnp.sum(xc * wc, axis=-1, keepdims=True)
        acc = jax.lax.fori_loop(0, n_full, body, acc)
    if rem > 0:
        xr = x_ref[:, pl.ds(n_full * _LANE_CHUNK, rem)]
        wr = w_ref[:, pl.ds(n_full * _LANE_CHUNK, rem)]
        acc = acc + jnp.sum(xr * wr, axis=-1, keepdims=True)
    return acc


def _linear_kernel(x_ref, w_ref, b_ref, o_ref, acc_ref):
    # x_ref:   (tb, td) VMEM tile of X (streamed over batch and, for huge D, over D)
    # w_ref:   (1, td)  VMEM weight tile (resident when D fits one block)
    # b_ref:   (1, 1)   SMEM scalar bias
    # o_ref:   (tb, 1)  VMEM output tile (same block across the D axis)
    # acc_ref: (tb, 1)  f32 VMEM accumulator scratch
    j = pl.program_id(1)

    @pl.when(j == 0)
    def _():
        acc_ref[...] = jnp.zeros_like(acc_ref)

    tb, td = x_ref.shape
    acc_ref[...] += _reduce_rows(x_ref, w_ref, tb, td)

    @pl.when(j == pl.num_programs(1) - 1)
    def _():
        o_ref[...] = acc_ref[...] + b_ref[0, 0]


def _vmem_limit_bytes():
    """Per-generation VMEM limit: <=48 MiB on v7x (64 MiB), ~100 MiB on v5e/v6e."""
    try:
        cap = int(pltpu.get_tpu_info().vmem_capacity_bytes)
    except Exception:
        cap = 64 * 1024 * 1024  # conservative fallback (v7x per-TC VMEM)
    limit = min(cap - 16 * 1024 * 1024, 100 * 1024 * 1024)
    return max(limit, 32 * 1024 * 1024)


def _pick_tiles(batch, d, vmem_limit):
    """Choose (tb, td): bytes-based, lane-padding aware, double-buffer aware."""
    d_pad = -(-d // 128) * 128
    # D block: whole row if it fits a sane block, else chunk D via a grid axis.
    td = d if d_pad <= _MAX_D_BLOCK else _MAX_D_BLOCK
    td_pad = -(-td // 128) * 128
    chunk = min(td_pad, _LANE_CHUNK)
    budget = int(vmem_limit * 0.75)          # headroom under the hard limit
    # Per-batch-row VMEM bytes (f32), lane-padded:
    #   X tile        : 2 buffers x td_pad lanes
    #   out tile      : 2 buffers x 128 lanes ((tb,1) pads to 128 lanes)
    #   acc scratch   : 128 lanes
    #   x*w chunk tmp : `chunk` lanes
    per_row = 4 * (2 * td_pad + 2 * 128 + 128 + chunk)
    fixed = 4 * 2 * td_pad                   # (1, td) weight block (double-buffered)
    tb = (budget - fixed) // per_row
    tb = max(8, (tb // 8) * 8)               # sublane multiple
    if batch <= tb:
        tb = batch                           # single full block along batch
    return tb, td


def scad_linear_forward(x, weight, bias):
    """y = x @ weight.T + bias, batch-tiled Pallas kernel (VPU mul + lane reduce).

    x:      (batch, input_size) float
    weight: (1, input_size)     float   (PyTorch nn.Linear layout, NOT transposed)
    bias:   (1,)                float
    returns (batch, 1)          float32
    """
    x = x.astype(jnp.float32)
    w = weight.astype(jnp.float32)                # (1, D), kept lane-dense
    b = bias.reshape(1, 1).astype(jnp.float32)    # scalar in SMEM

    batch, d = x.shape
    vmem_limit = _vmem_limit_bytes()
    tb, td = _pick_tiles(batch, d, vmem_limit)

    if td < d:
        # Huge-D path: pad D to a multiple of the D block (zero pad is exact).
        d_new = ((d + td - 1) // td) * td
        if d_new != d:
            x = jnp.pad(x, ((0, 0), (0, d_new - d)))
            w = jnp.pad(w, ((0, 0), (0, d_new - d)))
        d = d_new

    nb = pl.cdiv(batch, tb)
    nd = d // td

    return pl.pallas_call(
        _linear_kernel,
        out_shape=jax.ShapeDtypeStruct((batch, 1), jnp.float32),
        grid=(nb, nd),
        in_specs=[
            pl.BlockSpec((tb, td), lambda i, j: (i, j)),   # X: streamed
            pl.BlockSpec((1, td), lambda i, j: (0, j)),    # W: resident when nd==1
            pl.BlockSpec(memory_space=pltpu.SMEM),         # bias scalar
        ],
        out_specs=pl.BlockSpec((tb, 1), lambda i, j: (i, 0)),
        scratch_shapes=[pltpu.VMEM((tb, 1), jnp.float32)],
        compiler_params=pltpu.CompilerParams(
            dimension_semantics=("parallel", "arbitrary"),
            vmem_limit_bytes=vmem_limit,
        ),
    )(x, w, b)


# TODO(synk): scad_penalty / scad_derivative / loss / fit are training-time
# helpers (elementwise on the (1, input_size) weight) and are not part of
# forward(); plain-JAX reference below only, not kernelized.
def scad_penalty_ref(beta_hat, lambda_val, a_val):
    ab = jnp.abs(beta_hat)
    is_linear = (ab <= lambda_val).astype(jnp.float32)
    is_quadratic = jnp.logical_and(lambda_val < ab, ab <= a_val * lambda_val).astype(jnp.float32)
    is_constant = (a_val * lambda_val < ab).astype(jnp.float32)
    linear_part = lambda_val * ab * is_linear
    quadratic_part = (2 * a_val * lambda_val * ab - beta_hat ** 2 - lambda_val ** 2) / (
        2 * (a_val - 1)) * is_quadratic
    constant_part = lambda_val ** 2 * (a_val + 1) / 2 * is_constant
    return linear_part + quadratic_part + constant_part


if __name__ == "__main__":
    key = jax.random.PRNGKey(0)
    batch, input_size = 8, 32
    lambda_val, a_val = 0.1, 3.7  # unused in forward(); kept for parity with the module

    k_x, k_w, k_b = jax.random.split(key, 3)
    # Deterministic parameter init mimicking nn.Linear's U(-1/sqrt(in), 1/sqrt(in)).
    bound = 1.0 / jnp.sqrt(jnp.float32(input_size))
    weight = jax.random.uniform(k_w, (1, input_size), jnp.float32, -bound, bound)
    bias = jax.random.uniform(k_b, (1,), jnp.float32, -bound, bound)
    x = jax.random.normal(k_x, (batch, input_size), jnp.float32)

    y = scad_linear_forward(x, weight, bias)
    y = jax.block_until_ready(y)

    # correctness check against plain-JAX reference
    y_ref = x @ weight.T + bias
    assert y.shape == (batch, 1)
    assert jnp.allclose(y, y_ref, atol=1e-5, rtol=1e-5)

    print("KERNEL_OK")
</pallas_src>

<mosaic_0001>
module attributes {stable_mosaic.version = 11 : i64} {
  func.func @_linear_kernel(%arg0: i32, %arg1: i32, %arg2: memref<8x32xf32, #tpu.memory_space<vmem>>, %arg3: memref<1x32xf32, #tpu.memory_space<vmem>>, %arg4: memref<1x1xf32, #tpu.memory_space<smem>>, %arg5: memref<8x1xf32, #tpu.memory_space<vmem>>, %arg6: memref<8x1xf32, #tpu.memory_space<vmem>>) attributes {dimension_semantics = [#tpu.dimension_semantics<parallel>, #tpu.dimension_semantics<arbitrary>], iteration_bounds = array<i64: 1, 1>, scalar_prefetch = 0 : i64, scratch_operands = 1 : i64, tpu.core_type = #tpu.core_type<tc>, window_params = [{transform_indices = @transform_0, window_bounds = array<i64: 8, 32>}, {transform_indices = @transform_1, window_bounds = array<i64: 1, 32>}, {transform_indices = @transform_2, window_bounds = array<i64: 1, 1>}, {transform_indices = @transform_3, window_bounds = array<i64: 8, 1>}]} {
    %c0_i32 = arith.constant 0 : i32
    %0 = arith.cmpi eq, %arg1, %c0_i32 : i32
    %1 = arith.extui %0 : i1 to i32
    %c0_i32_0 = arith.constant 0 : i32
    %2 = arith.cmpi ne, %1, %c0_i32_0 : i32
    scf.if %2 {
      %cst_11 = arith.constant 0.000000e+00 : f32
      %17 = vector.broadcast %cst_11 : f32 to vector<8x1xf32>
      %c0_12 = arith.constant 0 : index
      %c0_13 = arith.constant 0 : index
      %18 = vector.load %arg6[%c0_12, %c0_13] : memref<8x1xf32, #tpu.memory_space<vmem>>, vector<8x1xf32>
      tpu.vector_store %arg6[%c0_12, %c0_13], %17 {strides = array<i32>} : memref<8x1xf32, #tpu.memory_space<vmem>>, vector<8x1xf32>,
    } else {
    }
    %c0 = arith.constant 0 : index
    %c0_1 = arith.constant 0 : index
    %3 = vector.load %arg6[%c0, %c0_1] : memref<8x1xf32, #tpu.memory_space<vmem>>, vector<8x1xf32>
    %cst = arith.constant 0.000000e+00 : f32
    %4 = vector.broadcast %cst : f32 to vector<8x1xf32>
    %c0_2 = arith.constant 0 : index
    %c0_3 = arith.constant 0 : index
    %5 = vector.load %arg2[%c0_2, %c0_3] : memref<8x32xf32, #tpu.memory_space<vmem>>, vector<8x32xf32>
    %c0_4 = arith.constant 0 : index
    %c0_5 = arith.constant 0 : index
    %6 = vector.load %arg3[%c0_4, %c0_5] : memref<1x32xf32, #tpu.memory_space<vmem>>, vector<1x32xf32>
    %7 = vector.broadcast %6 : vector<1x32xf32> to vector<8x32xf32>
    %8 = arith.mulf %5, %7 : vector<8x32xf32>
    %cst_6 = arith.constant dense<0.000000e+00> : vector<8xf32>
    %9 = vector.multi_reduction <add>, %8, %cst_6 [1] : vector<8x32xf32> to vector<8xf32>
    %10 = vector.shape_cast %9 : vector<8xf32> to vector<8x1xf32>
    %11 = arith.addf %4, %10 : vector<8x1xf32>
    %12 = arith.addf %3, %11 : vector<8x1xf32>
    %c0_7 = arith.constant 0 : index
    %c0_8 = arith.constant 0 : index
    %13 = vector.load %arg6[%c0_7, %c0_8] : memref<8x1xf32, #tpu.memory_space<vmem>>, vector<8x1xf32>
    tpu.vector_store %arg6[%c0_7, %c0_8], %12 {strides = array<i32>} : memref<8x1xf32, #tpu.memory_space<vmem>>, vector<8x1xf32>,
    %c0_i32_9 = arith.constant 0 : i32
    %14 = arith.cmpi eq, %arg1, %c0_i32_9 : i32
    %15 = arith.extui %14 : i1 to i32
    %c0_i32_10 = arith.constant 0 : i32
    %16 = arith.cmpi ne, %15, %c0_i32_10 : i32
    scf.if %16 {
      %c0_11 = arith.constant 0 : index
      %c0_12 = arith.constant 0 : index
      %17 = vector.load %arg6[%c0_11, %c0_12] : memref<8x1xf32, #tpu.memory_space<vmem>>, vector<8x1xf32>
      %c0_13 = arith.constant 0 : index
      %c0_14 = arith.constant 0 : index
      %18 = memref.load %arg4[%c0_13, %c0_14] : memref<1x1xf32, #tpu.memory_space<smem>>
      %19 = vector.broadcast %18 : f32 to vector<8x1xf32>
      %20 = arith.addf %17, %19 : vector<8x1xf32>
      %c0_15 = arith.constant 0 : index
      %c0_16 = arith.constant 0 : index
      %21 = vector.load %arg5[%c0_15, %c0_16] : memref<8x1xf32, #tpu.memory_space<vmem>>, vector<8x1xf32>
      tpu.vector_store %arg5[%c0_15, %c0_16], %20 {strides = array<i32>} : memref<8x1xf32, #tpu.memory_space<vmem>>, vector<8x1xf32>,
    } else {
    }
    return
  }
  func.func @transform_0(%arg0: i32, %arg1: i32) -> (i32, i32) {
    %c0_i32 = arith.constant 0 : i32
    return %arg0, %arg1 : i32, i32
  }
  func.func @transform_1(%arg0: i32, %arg1: i32) -> (i32, i32) {
    %c0_i32 = arith.constant 0 : i32
    %c0_i32_0 = arith.constant 0 : i32
    return %c0_i32, %arg1 : i32, i32
  }
  func.func @transform_2(%arg0: i32, %arg1: i32) -> (i32, i32) {
    %c0_i32 = arith.constant 0 : i32
    %c0_i32_0 = arith.constant 0 : i32
    %c0_i32_1 = arith.constant 0 : i32
    return %c0_i32, %c0_i32_0 : i32, i32
  }
  func.func @transform_3(%arg0: i32, %arg1: i32) -> (i32, i32) {
    %c0_i32 = arith.constant 0 : i32
    %c0_i32_0 = arith.constant 0 : i32
    return %arg0, %c0_i32 : i32, i32
  }
}

</mosaic_0001>

<llo_original>
// kernel: tpu_custom_call.1
$region0: #{tpu_custom_call.1}
  #allocation0 [shape = 'u32[]', space=smem, size = 0x4, offset = 0x4, fixed_abs, tag = 'smem constant byte address 0x4 - core index']
  #allocation1 [shape = 'u32[144,128]{1,0:T(1,128)}', space=vmem, size = 0x12000, scoped, tag = 'internal scratch']
  #allocation2 [shape = 'f32[8,1]{1,0:T(8,128)}', space=vmem, size = 0x1000, scoped, tag = 'scratch operand']
  #allocation3 [shape = 'f32[1,1]{1,0:T(1,128)S(6)}', space=smem, size = 0x200, scoped, tag = 'scoped memory for tpu_custom_call.1']
  %s0 = inlined_call_operand.hbm [shape: f32[8,32], index: 0, kind: input, shape index: {}]
  %s1 = inlined_call_operand.vmem [shape: f32[1,32], index: 1, kind: input, shape index: {}]
  %s2 = inlined_call_operand.<no memory space> [shape: f32[1,1], index: 2, kind: input, shape index: {}]
  %s3 = inlined_call_operand.vmem [shape: f32[8,1], index: 3, kind: output, shape index: {}]
  %s4 = sld [smem:[#allocation0]]
  $region34: #{tpu_custom_call.1} parent=0
    _
  %s6 = ssub.s32 1, %s4
  %s7 = scalar_select 0, %s6, %s4
  %8 = sst [smem:[#allocation3]] %s2
  $region1: #{tpu_custom_call.1} parent=0
    #allocation4 [shape = 'u8[4096]{0}', space=vmem, size = 0x1000, scoped, tag = 'input window, operand 0, single buffered']
    #allocation5 [shape = 's32[1]{0}', space=sflag, size = 0x4, scoped, tag = 'scoped memory for tpu_custom_call.1']
    %9 = vsyncpa [#allocation5], 0
    // Predicated region
    $region2: #{tpu_custom_call.1} parent=1 // pred_check
      _
    $region3: #{tpu_custom_call.1} parent=1 // pred_check_branch
      %11 = sbr.rel (0) target = $region5
    $region4: #{tpu_custom_call.1} parent=1 // pred_region
      %s13 = ssub.s32 128, 128
      %14 = vsyncadd [#allocation5], %s13
      %s16 = sshll.u32 [#allocation4], 4
      %s17 = int_to_ptr.vmem [resolvable:$true] %s16
      %19 = dma.hbm_to_vmem [thread:$0]  %s0, 128, %s17, [#allocation5]
    $region5: #{tpu_custom_call.1} parent=1 // pred_fallthru
      _
    // Predicated region
    $region6: #{tpu_custom_call.1} parent=1 // pred_check
      _
    $region7: #{tpu_custom_call.1} parent=1 // pred_check_branch
      %21 = sbr.rel (0) target = $region9
    $region8: #{tpu_custom_call.1} parent=1 // pred_region
      _
    $region9: #{tpu_custom_call.1} parent=1 // pred_fallthru
      _
    // Predicated region
    $region10: #{tpu_custom_call.1} parent=1 // pred_check
      _
    $region11: #{tpu_custom_call.1} parent=1 // pred_check_branch
      %23 = sbr.rel (0) target = $region13
    $region12: #{tpu_custom_call.1} parent=1 // pred_region
      _
    $region13: #{tpu_custom_call.1} parent=1 // pred_fallthru
      _
    // Predicated region
    $region14: #{tpu_custom_call.1} parent=1 // pred_check
      _
    $region15: #{tpu_custom_call.1} parent=1 // pred_check_branch
      %25 = sbr.rel (0) target = $region17
    $region16: #{tpu_custom_call.1} parent=1 // pred_region
      %26 = dma.done [#allocation5], 128
    $region17: #{tpu_custom_call.1} parent=1 // pred_fallthru
      _
    %p27 = scmp.eq.s32.totalorder 0, 0
    // Predicated region
    $region18: #{tpu_custom_call.1} parent=1 // pred_check
      %p28 = pneg %p27
    $region19: #{tpu_custom_call.1} parent=1 // pred_check_branch
      %30 = sbr.rel (%p28) target = $region21
    $region20: #{tpu_custom_call.1} parent=1 // pred_region
      %vm31 = vcmask 7168
      %32 = vst.msk [vmem:[#allocation2] sm:$0xff] %vm31, 0.0
    $region21: #{tpu_custom_call.1} parent=1 // pred_fallthru
      _
    %v33 = vld [vmem:[#allocation2] sm:$0xff]
    %v34 = vld [vmem:[#allocation4] sm:$0xff]
    %v35 = vld [vmem:[%s1] sm:$0x1]
    %v37 = vlaneseq
    %v38 = vshrl.u32 %v37, 7
    %v39 = vsub.s32 0, %v38
    %v40 = vrot.slane %v35, %v39
    %v42 = vmul.f32 %v34, %v40
    %vm43 = vcmask 261120
    %v44 = vsel %vm43, %v42, 0.0
    %45 = vadd.xlane.f32.xlu0 %v44
    %v46 = vpop.xlane.xlu0 %45
    %v47 = vadd.f32 %v46, 0.0
    %v48 = vadd.f32 %v33, %v47
    %vm49 = vcmask 7168
    %50 = vst.msk [vmem:[#allocation2] sm:$0xff] %vm49, %v48
    // Predicated region
    $region22: #{tpu_custom_call.1} parent=1 // pred_check
      %p51 = pneg %p27
    $region23: #{tpu_custom_call.1} parent=1 // pred_check_branch
      %53 = sbr.rel (%p51) target = $region25
    $region24: #{tpu_custom_call.1} parent=1 // pred_region
      %v54 = vld [vmem:[#allocation2] sm:$0xff]
      %s55 = sld [smem:[#allocation3]]
      %v56 = vstv %s55
      %v57 = vadd.f32 %v54, %v56
      %58 = vst.msk [vmem:[%s3] sm:$0xff] %vm49, %v57
    $region25: #{tpu_custom_call.1} parent=1 // pred_fallthru
      _
    // Predicated region
    $region26: #{tpu_custom_call.1} parent=1 // pred_check
      _
    $region27: #{tpu_custom_call.1} parent=1 // pred_check_branch
      %60 = sbr.rel (0) target = $region29
    $region28: #{tpu_custom_call.1} parent=1 // pred_region
      _
    $region29: #{tpu_custom_call.1} parent=1 // pred_fallthru
      _
    // Predicated region
    $region30: #{tpu_custom_call.1} parent=1 // pred_check
      _
    $region31: #{tpu_custom_call.1} parent=1 // pred_check_branch
      %62 = sbr.rel (0) target = $region33
    $region32: #{tpu_custom_call.1} parent=1 // pred_region
      _
    $region33: #{tpu_custom_call.1} parent=1 // pred_fallthru
      _
    %63 = vsyncpa [#allocation5], 1

</llo_original>
